<compile_context>
chip_gen: v5e
topology: v5e:2x2
jax: 0.10.0
libtpu: 0.0.40
codegen_flags: <defaults>
</compile_context>

<pallas_src>
import jax
import jax.numpy as jnp
from jax.experimental import pallas as pl
from jax.experimental.pallas import tpu as pltpu


# ----------------------------- Pallas kernel ------------------------------ #
def _prefix_out_kernel(h_ref, w2_ref, b2_ref, o_ref):
    # out tile = h @ W2[:, j*tn:(j+1)*tn] + b2 tile.  bf16 MXU path, f32 acc.
    # h is tiny and resident; W2/b2/out stream through double-buffered tiles.
    o_ref[...] = (
        jnp.dot(h_ref[...], w2_ref[...], preferred_element_type=jnp.float32)
        + b2_ref[...]
    ).astype(o_ref.dtype)


# ------------------------- tiling / budget helpers ------------------------- #
def _vmem_limit_bytes():
    """Generation-aware scoped-VMEM limit: half of physical VMEM, capped at
    64 MiB.  -> 64 MiB on v5e/v6e (128 MiB physical), 32 MiB on v7x (64 MiB)."""
    try:
        cap = pltpu.get_tpu_info().vmem_capacity_bytes
    except Exception:
        cap = 128 * 1024 * 1024
    return min(cap // 2, 64 * 1024 * 1024)


def _max_tile_from_budget(mid, m_pad, vmem_limit_bytes,
                          w2_itemsize=2, b2_itemsize=4, out_itemsize=2):
    """Largest lane-aligned N tile such that the double-buffered streaming
    tiles (W2 (mid,tn) + b2 (1,tn) + out (m_pad,tn)) use <= half the scoped
    VMEM limit (the other half is headroom for the resident h and slack)."""
    bytes_per_col = 2 * (mid * w2_itemsize + b2_itemsize + m_pad * out_itemsize)
    budget = vmem_limit_bytes // 2
    return max(256, (budget // bytes_per_col) // 256 * 256)


def _pick_tile_n(out_dim, max_tile):
    """Pick (tile_n, padded_out_dim).  Prefers lane-aligned divisors of out_dim
    (no padding); never returns a block larger than max_tile when out_dim is
    large (fixes the v1 fallback that could make the whole W2 one block)."""
    # Keep >= 4 tiles (>= 2 per v7x TensorCore) when the output dim allows it.
    if out_dim >= 4 * 256:
        max_tile = min(max_tile, max(256, (out_dim // 4) // 256 * 256))
    if out_dim <= max_tile:
        return out_dim, out_dim
    for step in (256, 128):
        tn = (max_tile // step) * step
        while tn >= step:
            if out_dim % tn == 0:
                return tn, out_dim
            tn -= step
    # No aligned divisor: bounded lane-aligned tile + zero-padded columns.
    tn = max(128, (max_tile // 128) * 128)
    return tn, pl.cdiv(out_dim, tn) * tn


# ------------------------------- host wrapper ------------------------------ #
def prefix_control_trans(x, w1, b1, w2, b2, *, out_dtype=jnp.bfloat16):
    """x: (P, n_embd) -> (P, n_layer*2*n_embd) through Linear-Tanh-Linear.
    The tiny first GEMM runs in XLA; the Pallas kernel streams W2 with a 1-D
    parallel grid over lane-aligned N tiles."""
    M, _ = x.shape
    mid = w1.shape[1]
    out_dim = w2.shape[1]

    # Hoisted first GEMM + tanh (a few KB of work, irrelevant to wall time).
    h = jnp.tanh(x.astype(jnp.float32) @ w1.astype(jnp.float32) + b1)
    h = h.astype(jnp.bfloat16)

    # Pad rows to the bf16 sublane tile (16) -> unmasked vst, full vregs.
    sub = 16 if jnp.dtype(out_dtype).itemsize == 2 else 8
    m_pad = pl.cdiv(M, sub) * sub
    if m_pad != M:
        h = jnp.pad(h, ((0, m_pad - M), (0, 0)))

    vmem_limit = _vmem_limit_bytes()
    max_tile = _max_tile_from_budget(mid, m_pad, vmem_limit,
                                     w2_itemsize=jnp.dtype(w2.dtype).itemsize,
                                     b2_itemsize=jnp.dtype(b2.dtype).itemsize,
                                     out_itemsize=jnp.dtype(out_dtype).itemsize)
    tn, n_pad = _pick_tile_n(out_dim, max_tile)
    if n_pad != out_dim:
        w2 = jnp.pad(w2, ((0, 0), (0, n_pad - out_dim)))
        b2 = jnp.pad(b2, ((0, 0), (0, n_pad - out_dim)))
    n_tiles = n_pad // tn

    cost = pl.CostEstimate(
        flops=2 * m_pad * mid * n_pad,
        transcendentals=0,
        bytes_accessed=(h.size * h.dtype.itemsize
                        + w2.size * w2.dtype.itemsize
                        + b2.size * b2.dtype.itemsize
                        + m_pad * n_pad * jnp.dtype(out_dtype).itemsize),
    )

    out = pl.pallas_call(
        _prefix_out_kernel,
        out_shape=jax.ShapeDtypeStruct((m_pad, n_pad), out_dtype),
        grid=(n_tiles,),
        in_specs=[
            pl.BlockSpec((m_pad, mid), lambda j: (0, 0)),   # h : resident
            pl.BlockSpec((mid, tn),    lambda j: (0, j)),   # W2: streamed along N
            pl.BlockSpec((1, tn),      lambda j: (0, j)),   # b2: streamed along N
        ],
        out_specs=pl.BlockSpec((m_pad, tn), lambda j: (0, j)),
        compiler_params=pltpu.CompilerParams(
            dimension_semantics=("parallel",),              # megacore-split N
            vmem_limit_bytes=vmem_limit),
        cost_estimate=cost,
    )(h, w2, b2)
    return out[:M, :out_dim]


# --------------------------- PrefixTuning module --------------------------- #
class PrefixTuningPallas:
    def __init__(self, preseqlen=8, n_layer=8, n_head=8, n_embd=256, mid_dim=128,
                 key=jax.random.PRNGKey(0)):
        assert n_embd % n_head == 0
        self.preseqlen = preseqlen
        self.match_n_layer = n_layer
        self.match_n_head = n_head
        self.match_n_embd = n_embd // n_head
        self.n_embd = n_embd
        self.mid_dim = mid_dim

        k_wte, k_w1, k_b1, k_w2, k_b2 = jax.random.split(key, 5)
        out_dim = n_layer * 2 * n_embd
        # Deterministic synthetic parameters (same shapes as nn.Embedding /
        # nn.Linear in the PyTorch module).  Weights bf16, biases f32.
        # W2's columns are ordered as contiguous (layer*2, head, head_dim)
        # blocks, matching the PyTorch Linear + .view() semantics.
        self.wte = (jax.random.normal(k_wte, (preseqlen, n_embd), jnp.float32)
                    * 0.02).astype(jnp.bfloat16)
        self.w1 = (jax.random.normal(k_w1, (n_embd, mid_dim), jnp.float32)
                   * 0.02).astype(jnp.bfloat16)
        self.b1 = jax.random.normal(k_b1, (1, mid_dim), jnp.float32) * 0.02
        self.w2 = (jax.random.normal(k_w2, (mid_dim, out_dim), jnp.float32)
                   * 0.02).astype(jnp.bfloat16)
        self.b2 = jax.random.normal(k_b2, (1, out_dim), jnp.float32) * 0.02

        self.input_tokens = jnp.arange(preseqlen, dtype=jnp.int32)
        # Cached batch-independent prefix, shape (L*2, H, P, Dh); computed once.
        # (Valid for frozen weights + eval-mode dropout, as in the spec.)
        self._prefix_cached = None

    def _compute_prefix(self):
        # wte(arange(P)) == the wte weight matrix itself -> feed it directly.
        pkv = prefix_control_trans(self.wte, self.w1, self.b1,
                                   self.w2, self.b2)             # (P, L*2*E)
        pkv = pkv.reshape(self.preseqlen, self.match_n_layer * 2,
                          self.match_n_head, self.match_n_embd)  # (P, L2, H, Dh)
        # One-time axis move; per-call work below is only a batch broadcast.
        return jnp.transpose(pkv, (1, 2, 0, 3))                  # (L2, H, P, Dh)

    def get_prompt_p5(self, bsz):
        if self._prefix_cached is None:
            self._prefix_cached = self._compute_prefix()
        L2 = self.match_n_layer * 2
        # nn.Dropout(0.3) in eval mode is identity.
        pkv = jnp.broadcast_to(
            self._prefix_cached[:, None],
            (L2, bsz, self.match_n_head, self.preseqlen, self.match_n_embd))
        # split(2) along dim 0 -> tuple of n_layer (key, value) pairs.
        return tuple(pkv[2 * i:2 * i + 2] for i in range(self.match_n_layer))

    def forward(self, input_ids, past_key_values=None, attention_mask=None):
        bsz, seq_len = input_ids.shape
        if past_key_values is None:
            mask = jnp.ones((bsz, self.preseqlen + seq_len), jnp.float32)
            past_key_values = self.get_prompt_p5(bsz)
        else:
            mask = jnp.concatenate(
                [jnp.ones((bsz, self.preseqlen), jnp.float32),
                 attention_mask.astype(jnp.float32)], axis=1)
        # TODO(synk): frozen GPT2LMHeadModel backbone call has no Pallas
        # equivalent here; return the prefix past_key_values and mask instead.
        return past_key_values, mask


# ---------------------------------- main ----------------------------------- #
def _reference_prefix(module):
    """Pure-JAX reference using the same dtype recipe as the kernel path."""
    x = module.wte.astype(jnp.float32)
    h = jnp.tanh(x @ module.w1.astype(jnp.float32) + module.b1)
    h = h.astype(jnp.bfloat16).astype(jnp.float32)
    out = h @ module.w2.astype(jnp.float32) + module.b2
    return out.astype(jnp.bfloat16)


if __name__ == "__main__":
    key = jax.random.PRNGKey(0)
    # Small config (scaled-down DialoGPT-medium): out_dim = 8*2*256 = 4096; the
    # >=4-tiles rule gives tn = 1024 and a 4-step N grid, exercising the
    # index_map and the padded-row slicing.
    module = PrefixTuningPallas(preseqlen=8, n_layer=8, n_head=8, n_embd=256,
                                mid_dim=128, key=key)

    bsz, seq_len = 2, 8
    input_ids = jax.random.randint(jax.random.PRNGKey(1), (bsz, seq_len), 0, 100)
    attention_mask = jnp.ones((bsz, seq_len), jnp.float32)

    past_key_values, mask = module.forward(input_ids, None, attention_mask)
    past_key_values = jax.block_until_ready(past_key_values)
    mask = jax.block_until_ready(mask)

    # Shape checks (match torch permute([2,0,3,1,4]).split(2) semantics).
    assert len(past_key_values) == module.match_n_layer
    assert past_key_values[0].shape == (
        2, bsz, module.match_n_head, module.preseqlen, module.match_n_embd)
    assert mask.shape == (bsz, module.preseqlen + seq_len)

    # Numerical check of the Pallas MLP against the pure-JAX reference.
    L2 = module.match_n_layer * 2
    ref = _reference_prefix(module).reshape(
        module.preseqlen, L2, module.match_n_head, module.match_n_embd)
    ref = jnp.transpose(ref, (1, 2, 0, 3))                       # (L2, H, P, Dh)
    ref = jnp.broadcast_to(
        ref[:, None], (L2, bsz, module.match_n_head,
                       module.preseqlen, module.match_n_embd))
    got = jnp.concatenate(past_key_values, axis=0)
    assert jnp.allclose(got.astype(jnp.float32), ref.astype(jnp.float32),
                        atol=2e-3, rtol=2e-2), "mismatch vs reference"

    print("KERNEL_OK")
</pallas_src>

<mosaic_0001>
module attributes {stable_mosaic.version = 11 : i64} {
  func.func @_prefix_out_kernel(%arg0: i32, %arg1: memref<16x128xbf16, #tpu.memory_space<vmem>>, %arg2: memref<128x1024xbf16, #tpu.memory_space<vmem>>, %arg3: memref<1x1024xf32, #tpu.memory_space<vmem>>, %arg4: memref<16x1024xbf16, #tpu.memory_space<vmem>>) attributes {dimension_semantics = [#tpu.dimension_semantics<parallel>], iteration_bounds = array<i64: 4>, scalar_prefetch = 0 : i64, scratch_operands = 0 : i64, tpu.core_type = #tpu.core_type<tc>, window_params = [{pipeline_mode = #tpu.pipeline_mode<synchronous>, transform_indices = @transform_0, window_bounds = array<i64: 16, 128>}, {transform_indices = @transform_1, window_bounds = array<i64: 128, 1024>}, {transform_indices = @transform_2, window_bounds = array<i64: 1, 1024>}, {transform_indices = @transform_3, window_bounds = array<i64: 16, 1024>}]} {
    %c0 = arith.constant 0 : index
    %c0_0 = arith.constant 0 : index
    %0 = vector.load %arg1[%c0, %c0_0] : memref<16x128xbf16, #tpu.memory_space<vmem>>, vector<16x128xbf16>
    %c0_1 = arith.constant 0 : index
    %c0_2 = arith.constant 0 : index
    %1 = vector.load %arg2[%c0_1, %c0_2] : memref<128x1024xbf16, #tpu.memory_space<vmem>>, vector<128x1024xbf16>
    %cst = arith.constant dense<0.000000e+00> : vector<16x1024xf32>
    %2 = tpu.matmul %0, %1, %cst {dimension_numbers = #tpu.dot_dimension_numbers<[1], [0], [0], [1], [0, 0, 1, 1], [], []>} : vector<16x128xbf16>, vector<128x1024xbf16>, vector<16x1024xf32> -> vector<16x1024xf32>
    %c0_3 = arith.constant 0 : index
    %c0_4 = arith.constant 0 : index
    %3 = vector.load %arg3[%c0_3, %c0_4] : memref<1x1024xf32, #tpu.memory_space<vmem>>, vector<1x1024xf32>
    %4 = vector.broadcast %3 : vector<1x1024xf32> to vector<16x1024xf32>
    %5 = arith.addf %2, %4 : vector<16x1024xf32>
    %6 = arith.truncf %5 : vector<16x1024xf32> to vector<16x1024xbf16>
    %c0_5 = arith.constant 0 : index
    %c0_6 = arith.constant 0 : index
    %7 = vector.load %arg4[%c0_5, %c0_6] : memref<16x1024xbf16, #tpu.memory_space<vmem>>, vector<16x1024xbf16>
    tpu.vector_store %arg4[%c0_5, %c0_6], %6 {strides = array<i32>} : memref<16x1024xbf16, #tpu.memory_space<vmem>>, vector<16x1024xbf16>,
    return
  }
  func.func @transform_0(%arg0: i32) -> (i32, i32) {
    %c0_i32 = arith.constant 0 : i32
    %c0_i32_0 = arith.constant 0 : i32
    %c0_i32_1 = arith.constant 0 : i32
    return %c0_i32, %c0_i32_0 : i32, i32
  }
  func.func @transform_1(%arg0: i32) -> (i32, i32) {
    %c0_i32 = arith.constant 0 : i32
    %c0_i32_0 = arith.constant 0 : i32
    return %c0_i32, %arg0 : i32, i32
  }
  func.func @transform_2(%arg0: i32) -> (i32, i32) {
    %c0_i32 = arith.constant 0 : i32
    %c0_i32_0 = arith.constant 0 : i32
    return %c0_i32, %arg0 : i32, i32
  }
  func.func @transform_3(%arg0: i32) -> (i32, i32) {
    %c0_i32 = arith.constant 0 : i32
    %c0_i32_0 = arith.constant 0 : i32
    return %c0_i32, %arg0 : i32, i32
  }
}

</mosaic_0001>

<llo_original>
// kernel: tpu_custom_call.1
$region0: #{tpu_custom_call.1}
  #allocation0 [shape = 'u32[]', space=smem, size = 0x4, offset = 0x4, fixed_abs, tag = 'smem constant byte address 0x4 - core index']
  #allocation1 [shape = 'u32[72,128]{1,0:T(1,128)}', space=vmem, size = 0x9000, scoped, tag = 'internal scratch']
  %s0 = inlined_call_operand.hbm [shape: bf16[16,128], index: 0, kind: input, shape index: {}]
  %s1 = inlined_call_operand.hbm [shape: bf16[128,4096], index: 1, kind: input, shape index: {}]
  %s2 = inlined_call_operand.hbm [shape: f32[1,4096], index: 2, kind: input, shape index: {}]
  %s3 = inlined_call_operand.hbm [shape: bf16[16,4096], index: 3, kind: output, shape index: {}]
  %s4 = sld [smem:[#allocation0]]
  $region57: #{tpu_custom_call.1} parent=0
    _
  %s6 = ssub.s32 1, %s4
  %s7 = scalar_select 0, %s6, %s4
  $region1: #{tpu_custom_call.1} parent=0
    #allocation2 [shape = 'u8[4096]{0}', space=vmem, size = 0x1000, scoped, tag = 'input window, operand 0, single buffered']
    #allocation3 [shape = 's32[2]{0}', space=sflag, size = 0x8, scoped, tag = 'scoped memory for tpu_custom_call.1']
    #allocation4 [shape = 's32[2]{0}', space=sflag, size = 0x8, scoped, tag = 'scoped memory for tpu_custom_call.1']
    #allocation5 [shape = 'u8[524288]{0}', space=vmem, size = 0x80000, scoped, tag = 'input window, operand 1']
    #allocation6 [shape = 's32[2]{0}', space=sflag, size = 0x8, scoped, tag = 'scoped memory for tpu_custom_call.1']
    #allocation7 [shape = 'u8[8192]{0}', space=vmem, size = 0x2000, scoped, tag = 'input window, operand 2']
    #allocation8 [shape = 'u8[65536]{0}', space=vmem, size = 0x10000, scoped, tag = 'output window, operand 0']
    %8 = vsyncpa [#allocation3], 0
    %9 = vsyncpa [#allocation6], 0
    %s10 = scalar_lea.sflag [#allocation6], 1
    %11 = vsyncpa %s10, 0
    %12 = vsyncpa [#allocation4], 0
    %s13 = scalar_lea.sflag [#allocation4], 1
    %14 = vsyncpa %s13, 0
    loop: start=0, step=1, limit=6
    $region2: #{tpu_custom_call.1} parent=1 // loop_pre_header
      _
    $region3: #{tpu_custom_call.1} parent=1 // loop_header
      %s16 = sphi 0, %s20
      %p17 = scmp.ge.s32.totalorder %s16, 6
      %s24 = sphi 0, %s24
      %s26 = sphi 0, %s24
      %s27 = sphi 0, %s26
      %s41 = sphi 0, %s27
      %s47 = sphi 0, %s49
      %s50 = sphi 0, %s47
      %s51 = sphi 0, %s50
      %s67 = sphi 0, %s51
      %s73 = sphi 0, %s75
      %s76 = sphi 0, %s73
      %s77 = sphi 0, %s76
      %s93 = sphi 0, %s77
      %s99 = sphi 0, %s101
      %s102 = sphi 0, %s99
      %s103 = sphi 0, %s102
      %s119 = sphi 0, %s103
    $region4: #{tpu_custom_call.1} parent=1 // loop_header_branch
      %19 = sbr.rel (%p17) target = $region8
    $region5: #{tpu_custom_call.1} parent=1 // loop_body
      %s21 = ssub.s32 %s16, 1
      %s22 = ssub.s32 %s16, 2
      %s23 = sadd.s32 %s16, 1
      %s25 = sadd.s32 %s24, 1
      %p28 = scmp.eq.s32.totalorder %s16, 3
      %p29 = scmp.ne.s32.totalorder %s24, %s26
      %p30 = scmp.eq.s32.totalorder %s16, 0
      %p31 = por %p29, %p30
      %p32 = scmp.ne.s32.totalorder %s24, %s26
      %p33 = scmp.eq.s32.totalorder %s21, 3
      %p34 = por %p32, %p33
      %p35 = scmp.ne.s32.totalorder %s26, %s27
      %p36 = scmp.eq.s32.totalorder %s21, 0
      %p37 = por %p35, %p36
      %p38 = scmp.ne.s32.totalorder %s26, %s27
      %p39 = scmp.eq.s32.totalorder %s22, 3
      %p40 = por %p38, %p39
      %p42 = scmp.ne.s32.totalorder %s27, %s41
      %p43 = scmp.eq.s32.totalorder %s22, 0
      %p44 = por %p42, %p43
      %s45 = ssub.s32 %s16, %s23
      %p46 = scmp.eq.s32.totalorder %s45, 0
      %s48 = sadd.s32 %s47, 1
      %s49 = scalar_select %p46, %s47, %s48
      %p52 = pneg %p46
      %p53 = scmp.eq.s32.totalorder %s16, 3
      %p54 = por %p52, %p53
      %p55 = scmp.ne.s32.totalorder %s47, %s50
      %p56 = scmp.eq.s32.totalorder %s16, 0
      %p57 = por %p55, %p56
      %p58 = scmp.ne.s32.totalorder %s47, %s50
      %p59 = scmp.eq.s32.totalorder %s21, 3
      %p60 = por %p58, %p59
      %p61 = scmp.ne.s32.totalorder %s50, %s51
      %p62 = scmp.eq.s32.totalorder %s21, 0
      %p63 = por %p61, %p62
      %p64 = scmp.ne.s32.totalorder %s50, %s51
      %p65 = scmp.eq.s32.totalorder %s22, 3
      %p66 = por %p64, %p65
      %p68 = scmp.ne.s32.totalorder %s51, %s67
      %p69 = scmp.eq.s32.totalorder %s22, 0
      %p70 = por %p68, %p69
      %s71 = ssub.s32 %s16, %s23
      %p72 = scmp.eq.s32.totalorder %s71, 0
      %s74 = sadd.s32 %s73, 1
      %s75 = scalar_select %p72, %s73, %s74
      %p78 = pneg %p72
      %p79 = scmp.eq.s32.totalorder %s16, 3
      %p80 = por %p78, %p79
      %p81 = scmp.ne.s32.totalorder %s73, %s76
      %p82 = scmp.eq.s32.totalorder %s16, 0
      %p83 = por %p81, %p82
      %p84 = scmp.ne.s32.totalorder %s73, %s76
      %p85 = scmp.eq.s32.totalorder %s21, 3
      %p86 = por %p84, %p85
      %p87 = scmp.ne.s32.totalorder %s76, %s77
      %p88 = scmp.eq.s32.totalorder %s21, 0
      %p89 = por %p87, %p88
      %p90 = scmp.ne.s32.totalorder %s76, %s77
      %p91 = scmp.eq.s32.totalorder %s22, 3
      %p92 = por %p90, %p91
      %p94 = scmp.ne.s32.totalorder %s77, %s93
      %p95 = scmp.eq.s32.totalorder %s22, 0
      %p96 = por %p94, %p95
      %s97 = ssub.s32 %s16, %s23
      %p98 = scmp.eq.s32.totalorder %s97, 0
      %s100 = sadd.s32 %s99, 1
      %s101 = scalar_select %p98, %s99, %s100
      %p104 = pneg %p98
      %p105 = scmp.eq.s32.totalorder %s16, 3
      %p106 = por %p104, %p105
      %p107 = scmp.ne.s32.totalorder %s99, %s102
      %p108 = scmp.eq.s32.totalorder %s16, 0
      %p109 = por %p107, %p108
      %p110 = scmp.ne.s32.totalorder %s99, %s102
      %p111 = scmp.eq.s32.totalorder %s21, 3
      %p112 = por %p110, %p111
      %p113 = scmp.ne.s32.totalorder %s102, %s103
      %p114 = scmp.eq.s32.totalorder %s21, 0
      %p115 = por %p113, %p114
      %p116 = scmp.ne.s32.totalorder %s102, %s103
      %p117 = scmp.eq.s32.totalorder %s22, 3
      %p118 = por %p116, %p117
      %p120 = scmp.ne.s32.totalorder %s103, %s119
      %p121 = scmp.eq.s32.totalorder %s22, 0
      %p122 = por %p120, %p121
      %p123 = scmp.le.s32.totalorder 1, %s16
      %p124 = scmp.lt.s32.totalorder %s16, 5
      %p125 = pnand %p123, %p124
      %p126 = pneg %p125
      // Predicated region
      $region9: #{tpu_custom_call.1} parent=5 // pred_check
        _
      $region10: #{tpu_custom_call.1} parent=5 // pred_check_branch
        %128 = sbr.rel (%p125) target = $region12
      $region11: #{tpu_custom_call.1} parent=5 // pred_region
        %s129 = ssub.s32 %s16, 1
        // Predicated region
        $region13: #{tpu_custom_call.1} parent=11 // pred_check
          %p130 = pneg %p37
        $region14: #{tpu_custom_call.1} parent=11 // pred_check_branch
          %132 = sbr.rel (%p130) target = $region16
        $region15: #{tpu_custom_call.1} parent=11 // pred_region
          %134 = vsyncadd [#allocation3], 0
          %s135 = sshll.u32 %s0, 4
          %s136 = int_to_ptr.hbm [resolvable:$true] %s135
          %s137 = sshll.u32 [#allocation2], 4
          %s138 = int_to_ptr.vmem [resolvable:$true] %s137
          %143 = dma.hbm_to_vmem [thread:$0]  %s136, 128, %s138, [#allocation3], 64, 64, 4
        $region16: #{tpu_custom_call.1} parent=11 // pred_fallthru
          _
      $region12: #{tpu_custom_call.1} parent=5 // pred_fallthru
        _
      %p144 = scmp.lt.s32.totalorder %s16, 4
      // Predicated region
      $region17: #{tpu_custom_call.1} parent=5 // pred_check
        %p145 = pneg %p144
      $region18: #{tpu_custom_call.1} parent=5 // pred_check_branch
        %147 = sbr.rel (%p145) target = $region20
      $region19: #{tpu_custom_call.1} parent=5 // pred_region
        // Predicated region
        $region21: #{tpu_custom_call.1} parent=19 // pred_check
          %p148 = pneg %p57
        $region22: #{tpu_custom_call.1} parent=19 // pred_check_branch
          %150 = sbr.rel (%p148) target = $region24
        $region23: #{tpu_custom_call.1} parent=19 // pred_region
          %s151 = sand.u32 %s16, 1
          %s152 = scalar_lea.sflag [#allocation6], %s151
          %s153 = sand.u32 %s47, 1
          %s154 = smul.addr %s153, 512
          %s155 = scalar_lea.vmem [#allocation5], %s154
          %s156 = smul.u32 8, %s16
          %158 = vsyncadd %s152, 0
          %s159 = smul.addr %s156, 4
          %s160 = scalar_lea.hbm %s1, %s159
          %s161 = sshll.u32 %s160, 4
          %s162 = int_to_ptr.hbm [resolvable:$true] %s161
          %s163 = sshll.u32 %s155, 4
          %s164 = int_to_ptr.vmem [resolvable:$true] %s163
          %169 = dma.hbm_to_vmem [thread:$0]  %s162, 8192, %s164, %s152, 2048, 512, 32
        $region24: #{tpu_custom_call.1} parent=19 // pred_fallthru
          _
        // Predicated region
        $region25: #{tpu_custom_call.1} parent=19 // pred_check
          %p170 = pneg %p83
        $region26: #{tpu_custom_call.1} parent=19 // pred_check_branch
          %172 = sbr.rel (%p170) target = $region28
        $region27: #{tpu_custom_call.1} parent=19 // pred_region
          %s173 = sand.u32 %s16, 1
          %s174 = scalar_lea.sflag [#allocation6], %s173
          %s175 = sand.u32 %s73, 1
          %s176 = smul.addr %s175, 8
          %s177 = scalar_lea.vmem [#allocation7], %s176
          %s178 = smul.u32 8, %s16
          %180 = vsyncadd %s174, 0
          %s181 = scalar_lea.hbm %s2, %s178
          %s183 = sshll.u32 %s181, 4
          %s184 = int_to_ptr.hbm [resolvable:$true] %s183
          %s185 = sshll.u32 %s177, 4
          %s186 = int_to_ptr.vmem [resolvable:$true] %s185
          %188 = dma.hbm_to_vmem [thread:$0]  %s184, 128, %s186, %s174
        $region28: #{tpu_custom_call.1} parent=19 // pred_fallthru
          _
      $region20: #{tpu_custom_call.1} parent=5 // pred_fallthru
        _
      %p189 = scmp.le.s32.totalorder 1, %s16
      %p190 = scmp.lt.s32.totalorder %s16, 5
      %p191 = pnand %p189, %p190
      %p192 = pneg %p191
      // Predicated region
      $region29: #{tpu_custom_call.1} parent=5 // pred_check
        _
      $region30: #{tpu_custom_call.1} parent=5 // pred_check_branch
        %194 = sbr.rel (%p191) target = $region32
      $region31: #{tpu_custom_call.1} parent=5 // pred_region
        %s195 = ssub.s32 %s16, 1
        // Predicated region
        $region33: #{tpu_custom_call.1} parent=31 // pred_check
          %p196 = pneg %p37
        $region34: #{tpu_custom_call.1} parent=31 // pred_check_branch
          %198 = sbr.rel (%p196) target = $region36
        $region35: #{tpu_custom_call.1} parent=31 // pred_region
          %200 = dma.done [#allocation3], 128
        $region36: #{tpu_custom_call.1} parent=31 // pred_fallthru
          _
        %s201 = sand.u32 %s21, 1
        %s202 = scalar_lea.sflag [#allocation6], %s201
        %s203 = sand.u32 %s50, 1
        %s204 = smul.addr %s203, 512
        %s205 = scalar_lea.vmem [#allocation5], %s204
        // Predicated region
        $region37: #{tpu_custom_call.1} parent=31 // pred_check
          %p206 = pneg %p63
        $region38: #{tpu_custom_call.1} parent=31 // pred_check_branch
          %208 = sbr.rel (%p206) target = $region40
        $region39: #{tpu_custom_call.1} parent=31 // pred_region
          %210 = dma.done %s202, 8192
        $region40: #{tpu_custom_call.1} parent=31 // pred_fallthru
          _
        %s211 = sand.u32 %s21, 1
        %s212 = scalar_lea.sflag [#allocation6], %s211
        %s213 = sand.u32 %s76, 1
        %s214 = smul.addr %s213, 8
        %s215 = scalar_lea.vmem [#allocation7], %s214
        // Predicated region
        $region41: #{tpu_custom_call.1} parent=31 // pred_check
          %p216 = pneg %p89
        $region42: #{tpu_custom_call.1} parent=31 // pred_check_branch
          %218 = sbr.rel (%p216) target = $region44
        $region43: #{tpu_custom_call.1} parent=31 // pred_region
          %220 = dma.done %s212, 128
        $region44: #{tpu_custom_call.1} parent=31 // pred_fallthru
          _
        %p221 = pneg %p37
        %p222 = pneg %p34
        %s223 = sand.u32 %s21, 1
        %s224 = scalar_lea.sflag [#allocation6], %s223
        %s225 = sand.u32 %s50, 1
        %s226 = smul.addr %s225, 512
        %s227 = scalar_lea.vmem [#allocation5], %s226
        %p228 = pneg %p63
        %p229 = pneg %p60
        %s230 = sand.u32 %s21, 1
        %s231 = scalar_lea.sflag [#allocation6], %s230
        %s232 = sand.u32 %s76, 1
        %s233 = smul.addr %s232, 8
        %s234 = scalar_lea.vmem [#allocation7], %s233
        %p235 = pneg %p89
        %p236 = pneg %p86
        %p237 = pneg %p115
        %p238 = pneg %p112
        %s239 = sand.u32 %s102, 1
        %s240 = scalar_lea.sflag [#allocation4], %s239
        %s241 = sand.u32 %s102, 1
        %s242 = smul.addr %s241, 64
        %s243 = scalar_lea.vmem [#allocation8], %s242
        %s244 = smul.u32 8, %s21
        %s245 = smul.u32 8, %s21
        %s246 = smul.u32 8, %s21
        %v247 = vld [vmem:[#allocation2] sm:$0xf]
        %v248 = vld [vmem:[#allocation2 + $0x4] sm:$0xf]
        %v249 = vld [vmem:[%s205] sm:$0xff]
        %v250 = vld [vmem:[%s205 + $0x8] sm:$0xff]
        %v251 = vld [vmem:[%s205 + $0x10] sm:$0xff]
        %v252 = vld [vmem:[%s205 + $0x18] sm:$0xff]
        %v253 = vld [vmem:[%s205 + $0x20] sm:$0xff]
        %v254 = vld [vmem:[%s205 + $0x28] sm:$0xff]
        %v255 = vld [vmem:[%s205 + $0x30] sm:$0xff]
        %v256 = vld [vmem:[%s205 + $0x38] sm:$0xff]
        %v257 = vld [vmem:[%s205 + $0x40] sm:$0xff]
        %v258 = vld [vmem:[%s205 + $0x48] sm:$0xff]
        %v259 = vld [vmem:[%s205 + $0x50] sm:$0xff]
        %v260 = vld [vmem:[%s205 + $0x58] sm:$0xff]
        %v261 = vld [vmem:[%s205 + $0x60] sm:$0xff]
        %v262 = vld [vmem:[%s205 + $0x68] sm:$0xff]
        %v263 = vld [vmem:[%s205 + $0x70] sm:$0xff]
        %v264 = vld [vmem:[%s205 + $0x78] sm:$0xff]
        %v265 = vld [vmem:[%s205 + $0x80] sm:$0xff]
        %v266 = vld [vmem:[%s205 + $0x88] sm:$0xff]
        %v267 = vld [vmem:[%s205 + $0x90] sm:$0xff]
        %v268 = vld [vmem:[%s205 + $0x98] sm:$0xff]
        %v269 = vld [vmem:[%s205 + $0xa0] sm:$0xff]
        %v270 = vld [vmem:[%s205 + $0xa8] sm:$0xff]
        %v271 = vld [vmem:[%s205 + $0xb0] sm:$0xff]
        %v272 = vld [vmem:[%s205 + $0xb8] sm:$0xff]
        %v273 = vld [vmem:[%s205 + $0xc0] sm:$0xff]
        %v274 = vld [vmem:[%s205 + $0xc8] sm:$0xff]
        %v275 = vld [vmem:[%s205 + $0xd0] sm:$0xff]
        %v276 = vld [vmem:[%s205 + $0xd8] sm:$0xff]
        %v277 = vld [vmem:[%s205 + $0xe0] sm:$0xff]
        %v278 = vld [vmem:[%s205 + $0xe8] sm:$0xff]
        %v279 = vld [vmem:[%s205 + $0xf0] sm:$0xff]
        %v280 = vld [vmem:[%s205 + $0xf8] sm:$0xff]
        %v281 = vld [vmem:[%s205 + $0x100] sm:$0xff]
        %v282 = vld [vmem:[%s205 + $0x108] sm:$0xff]
        %v283 = vld [vmem:[%s205 + $0x110] sm:$0xff]
        %v284 = vld [vmem:[%s205 + $0x118] sm:$0xff]
        %v285 = vld [vmem:[%s205 + $0x120] sm:$0xff]
        %v286 = vld [vmem:[%s205 + $0x128] sm:$0xff]
        %v287 = vld [vmem:[%s205 + $0x130] sm:$0xff]
        %v288 = vld [vmem:[%s205 + $0x138] sm:$0xff]
        %v289 = vld [vmem:[%s205 + $0x140] sm:$0xff]
        %v290 = vld [vmem:[%s205 + $0x148] sm:$0xff]
        %v291 = vld [vmem:[%s205 + $0x150] sm:$0xff]
        %v292 = vld [vmem:[%s205 + $0x158] sm:$0xff]
        %v293 = vld [vmem:[%s205 + $0x160] sm:$0xff]
        %v294 = vld [vmem:[%s205 + $0x168] sm:$0xff]
        %v295 = vld [vmem:[%s205 + $0x170] sm:$0xff]
        %v296 = vld [vmem:[%s205 + $0x178] sm:$0xff]
        %v297 = vld [vmem:[%s205 + $0x180] sm:$0xff]
        %v298 = vld [vmem:[%s205 + $0x188] sm:$0xff]
        %v299 = vld [vmem:[%s205 + $0x190] sm:$0xff]
        %v300 = vld [vmem:[%s205 + $0x198] sm:$0xff]
        %v301 = vld [vmem:[%s205 + $0x1a0] sm:$0xff]
        %v302 = vld [vmem:[%s205 + $0x1a8] sm:$0xff]
        %v303 = vld [vmem:[%s205 + $0x1b0] sm:$0xff]
        %v304 = vld [vmem:[%s205 + $0x1b8] sm:$0xff]
        %v305 = vld [vmem:[%s205 + $0x1c0] sm:$0xff]
        %v306 = vld [vmem:[%s205 + $0x1c8] sm:$0xff]
        %v307 = vld [vmem:[%s205 + $0x1d0] sm:$0xff]
        %v308 = vld [vmem:[%s205 + $0x1d8] sm:$0xff]
        %v309 = vld [vmem:[%s205 + $0x1e0] sm:$0xff]
        %v310 = vld [vmem:[%s205 + $0x1e8] sm:$0xff]
        %v311 = vld [vmem:[%s205 + $0x1f0] sm:$0xff]
        %v312 = vld [vmem:[%s205 + $0x1f8] sm:$0xff]
        %v313 = vld [vmem:[%s215] sm:$0xff]
        %v315 = vperm.slane %v313, 0
        %v316 = vperm.slane %v313, 1
        %v317 = vperm.slane %v313, 2
        %v318 = vperm.slane %v313, 3
        %v319 = vperm.slane %v313, 4
        %v320 = vperm.slane %v313, 5
        %v321 = vperm.slane %v313, 6
        %v322 = vperm.slane %v313, 7
        %v333 = vunpack.c.l.b16 %v247
        %v334 = vunpack.c.l.b16 %v248
        %v335 = vpack.c.b16 %v334, %v333
        %v401 = vunpack.c.l.b16 %v249
        %v402 = vunpack.c.h.b16 %v249
        %v403 = vunpack.c.l.b16 %v250
        %v404 = vunpack.c.h.b16 %v250
        %v405 = vunpack.c.l.b16 %v251
        %v406 = vunpack.c.h.b16 %v251
        %v407 = vunpack.c.l.b16 %v252
        %v408 = vunpack.c.h.b16 %v252
        %v409 = vunpack.c.l.b16 %v253
        %v410 = vunpack.c.h.b16 %v253
        %v411 = vunpack.c.l.b16 %v254
        %v412 = vunpack.c.h.b16 %v254
        %v413 = vunpack.c.l.b16 %v255
        %v414 = vunpack.c.h.b16 %v255
        %v415 = vunpack.c.l.b16 %v256
        %v416 = vunpack.c.h.b16 %v256
        %v417 = vunpack.c.l.b16 %v257
        %v418 = vunpack.c.h.b16 %v257
        %v419 = vunpack.c.l.b16 %v258
        %v420 = vunpack.c.h.b16 %v258
        %v421 = vunpack.c.l.b16 %v259
        %v422 = vunpack.c.h.b16 %v259
        %v423 = vunpack.c.l.b16 %v260
        %v424 = vunpack.c.h.b16 %v260
        %v425 = vunpack.c.l.b16 %v261
        %v426 = vunpack.c.h.b16 %v261
        %v427 = vunpack.c.l.b16 %v262
        %v428 = vunpack.c.h.b16 %v262
        %v429 = vunpack.c.l.b16 %v263
        %v430 = vunpack.c.h.b16 %v263
        %v431 = vunpack.c.l.b16 %v264
        %v432 = vunpack.c.h.b16 %v264
        %v433 = vunpack.c.l.b16 %v265
        %v434 = vunpack.c.h.b16 %v265
        %v435 = vunpack.c.l.b16 %v266
        %v436 = vunpack.c.h.b16 %v266
        %v437 = vunpack.c.l.b16 %v267
        %v438 = vunpack.c.h.b16 %v267
        %v439 = vunpack.c.l.b16 %v268
        %v440 = vunpack.c.h.b16 %v268
        %v441 = vunpack.c.l.b16 %v269
        %v442 = vunpack.c.h.b16 %v269
        %v443 = vunpack.c.l.b16 %v270
        %v444 = vunpack.c.h.b16 %v270
        %v445 = vunpack.c.l.b16 %v271
        %v446 = vunpack.c.h.b16 %v271
        %v447 = vunpack.c.l.b16 %v272
        %v448 = vunpack.c.h.b16 %v272
        %v449 = vunpack.c.l.b16 %v273
        %v450 = vunpack.c.h.b16 %v273
        %v451 = vunpack.c.l.b16 %v274
        %v452 = vunpack.c.h.b16 %v274
        %v453 = vunpack.c.l.b16 %v275
        %v454 = vunpack.c.h.b16 %v275
        %v455 = vunpack.c.l.b16 %v276
        %v456 = vunpack.c.h.b16 %v276
        %v457 = vunpack.c.l.b16 %v277
        %v458 = vunpack.c.h.b16 %v277
        %v459 = vunpack.c.l.b16 %v278
        %v460 = vunpack.c.h.b16 %v278
        %v461 = vunpack.c.l.b16 %v279
        %v462 = vunpack.c.h.b16 %v279
        %v463 = vunpack.c.l.b16 %v280
        %v464 = vunpack.c.h.b16 %v280
        %v465 = vunpack.c.l.b16 %v281
        %v466 = vunpack.c.h.b16 %v281
        %v467 = vunpack.c.l.b16 %v282
        %v468 = vunpack.c.h.b16 %v282
        %v469 = vunpack.c.l.b16 %v283
        %v470 = vunpack.c.h.b16 %v283
        %v471 = vunpack.c.l.b16 %v284
        %v472 = vunpack.c.h.b16 %v284
        %v473 = vunpack.c.l.b16 %v285
        %v474 = vunpack.c.h.b16 %v285
        %v475 = vunpack.c.l.b16 %v286
        %v476 = vunpack.c.h.b16 %v286
        %v477 = vunpack.c.l.b16 %v287
        %v478 = vunpack.c.h.b16 %v287
        %v479 = vunpack.c.l.b16 %v288
        %v480 = vunpack.c.h.b16 %v288
        %v481 = vunpack.c.l.b16 %v289
        %v482 = vunpack.c.h.b16 %v289
        %v483 = vunpack.c.l.b16 %v290
        %v484 = vunpack.c.h.b16 %v290
        %v485 = vunpack.c.l.b16 %v291
        %v486 = vunpack.c.h.b16 %v291
        %v487 = vunpack.c.l.b16 %v292
        %v488 = vunpack.c.h.b16 %v292
        %v489 = vunpack.c.l.b16 %v293
        %v490 = vunpack.c.h.b16 %v293
        %v491 = vunpack.c.l.b16 %v294
        %v492 = vunpack.c.h.b16 %v294
        %v493 = vunpack.c.l.b16 %v295
        %v494 = vunpack.c.h.b16 %v295
        %v495 = vunpack.c.l.b16 %v296
        %v496 = vunpack.c.h.b16 %v296
        %v497 = vunpack.c.l.b16 %v297
        %v498 = vunpack.c.h.b16 %v297
        %v499 = vunpack.c.l.b16 %v298
        %v500 = vunpack.c.h.b16 %v298
        %v501 = vunpack.c.l.b16 %v299
        %v502 = vunpack.c.h.b16 %v299
        %v503 = vunpack.c.l.b16 %v300
        %v504 = vunpack.c.h.b16 %v300
        %v505 = vunpack.c.l.b16 %v301
        %v506 = vunpack.c.h.b16 %v301
        %v507 = vunpack.c.l.b16 %v302
        %v508 = vunpack.c.h.b16 %v302
        %v509 = vunpack.c.l.b16 %v303
        %v510 = vunpack.c.h.b16 %v303
        %v511 = vunpack.c.l.b16 %v304
        %v512 = vunpack.c.h.b16 %v304
        %v513 = vunpack.c.l.b16 %v305
        %v514 = vunpack.c.h.b16 %v305
        %v515 = vunpack.c.l.b16 %v306
        %v516 = vunpack.c.h.b16 %v306
        %v517 = vunpack.c.l.b16 %v307
        %v518 = vunpack.c.h.b16 %v307
        %v519 = vunpack.c.l.b16 %v308
        %v520 = vunpack.c.h.b16 %v308
        %v521 = vunpack.c.l.b16 %v309
        %v522 = vunpack.c.h.b16 %v309
        %v523 = vunpack.c.l.b16 %v310
        %v524 = vunpack.c.h.b16 %v310
        %v525 = vunpack.c.l.b16 %v311
        %v526 = vunpack.c.h.b16 %v311
        %v527 = vunpack.c.l.b16 %v312
        %v528 = vunpack.c.h.b16 %v312
        %v529 = vpack.c.b16 %v409, %v401
        %v530 = vpack.c.b16 %v410, %v402
        %v531 = vpack.c.b16 %v411, %v403
        %v532 = vpack.c.b16 %v412, %v404
        %v533 = vpack.c.b16 %v413, %v405
        %v534 = vpack.c.b16 %v414, %v406
        %v535 = vpack.c.b16 %v415, %v407
        %v536 = vpack.c.b16 %v416, %v408
        %v537 = vpack.c.b16 %v425, %v417
        %v538 = vpack.c.b16 %v426, %v418
        %v539 = vpack.c.b16 %v427, %v419
        %v540 = vpack.c.b16 %v428, %v420
        %v541 = vpack.c.b16 %v429, %v421
        %v542 = vpack.c.b16 %v430, %v422
        %v543 = vpack.c.b16 %v431, %v423
        %v544 = vpack.c.b16 %v432, %v424
        %v545 = vpack.c.b16 %v441, %v433
        %v546 = vpack.c.b16 %v442, %v434
        %v547 = vpack.c.b16 %v443, %v435
        %v548 = vpack.c.b16 %v444, %v436
        %v549 = vpack.c.b16 %v445, %v437
        %v550 = vpack.c.b16 %v446, %v438
        %v551 = vpack.c.b16 %v447, %v439
        %v552 = vpack.c.b16 %v448, %v440
        %v553 = vpack.c.b16 %v457, %v449
        %v554 = vpack.c.b16 %v458, %v450
        %v555 = vpack.c.b16 %v459, %v451
        %v556 = vpack.c.b16 %v460, %v452
        %v557 = vpack.c.b16 %v461, %v453
        %v558 = vpack.c.b16 %v462, %v454
        %v559 = vpack.c.b16 %v463, %v455
        %v560 = vpack.c.b16 %v464, %v456
        %v561 = vpack.c.b16 %v473, %v465
        %v562 = vpack.c.b16 %v474, %v466
        %v563 = vpack.c.b16 %v475, %v467
        %v564 = vpack.c.b16 %v476, %v468
        %v565 = vpack.c.b16 %v477, %v469
        %v566 = vpack.c.b16 %v478, %v470
        %v567 = vpack.c.b16 %v479, %v471
        %v568 = vpack.c.b16 %v480, %v472
        %v569 = vpack.c.b16 %v489, %v481
        %v570 = vpack.c.b16 %v490, %v482
        %v571 = vpack.c.b16 %v491, %v483
        %v572 = vpack.c.b16 %v492, %v484
        %v573 = vpack.c.b16 %v493, %v485
        %v574 = vpack.c.b16 %v494, %v486
        %v575 = vpack.c.b16 %v495, %v487
        %v576 = vpack.c.b16 %v496, %v488
        %v577 = vpack.c.b16 %v505, %v497
        %v578 = vpack.c.b16 %v506, %v498
        %v579 = vpack.c.b16 %v507, %v499
        %v580 = vpack.c.b16 %v508, %v500
        %v581 = vpack.c.b16 %v509, %v501
        %v582 = vpack.c.b16 %v510, %v502
        %v583 = vpack.c.b16 %v511, %v503
        %v584 = vpack.c.b16 %v512, %v504
        %v585 = vpack.c.b16 %v521, %v513
        %v586 = vpack.c.b16 %v522, %v514
        %v587 = vpack.c.b16 %v523, %v515
        %v588 = vpack.c.b16 %v524, %v516
        %v589 = vpack.c.b16 %v525, %v517
        %v590 = vpack.c.b16 %v526, %v518
        %v591 = vpack.c.b16 %v527, %v519
        %v592 = vpack.c.b16 %v528, %v520
        %657 = vmatpush.bf16.msra.mxu0 %v585
        %658 = vmatpush.bf16.msra.mxu0 %v577
        %659 = vmatpush.bf16.msra.mxu0 %v569
        %660 = vmatpush.bf16.msra.mxu0 %v561
        %661 = vmatpush.bf16.msra.mxu0 %v553
        %662 = vmatpush.bf16.msra.mxu0 %v545
        %663 = vmatpush.bf16.msra.mxu0 %v537
        %664 = vmatpush.bf16.msra.mxu0 %v529
        %665 = vmatmul.bf16.gmra.mxu0 %v335
        %v666 = vpop.f32.mrf.mxu0
        %v667 = vadd.f32 %v315, %v666
        %v668 = vpop.f32.mrf.mxu0
        %v669 = vadd.f32 %v315, %v668
        %670 = vdwg.mxu0
        %671 = vmatpush.bf16.msra.mxu0 %v586
        %672 = vmatpush.bf16.msra.mxu0 %v578
        %673 = vmatpush.bf16.msra.mxu0 %v570
        %674 = vmatpush.bf16.msra.mxu0 %v562
        %675 = vmatpush.bf16.msra.mxu0 %v554
        %676 = vmatpush.bf16.msra.mxu0 %v546
        %677 = vmatpush.bf16.msra.mxu0 %v538
        %678 = vmatpush.bf16.msra.mxu0 %v530
        %679 = vmatmul.bf16.gmra.mxu0 %v335
        %v680 = vpop.f32.mrf.mxu0
        %v681 = vadd.f32 %v316, %v680
        %v682 = vpop.f32.mrf.mxu0
        %v683 = vadd.f32 %v316, %v682
        %684 = vdwg.mxu0
        %685 = vmatpush.bf16.msra.mxu0 %v587
        %686 = vmatpush.bf16.msra.mxu0 %v579
        %687 = vmatpush.bf16.msra.mxu0 %v571
        %688 = vmatpush.bf16.msra.mxu0 %v563
        %689 = vmatpush.bf16.msra.mxu0 %v555
        %690 = vmatpush.bf16.msra.mxu0 %v547
        %691 = vmatpush.bf16.msra.mxu0 %v539
        %692 = vmatpush.bf16.msra.mxu0 %v531
        %693 = vmatmul.bf16.gmra.mxu0 %v335
        %v694 = vpop.f32.mrf.mxu0
        %v695 = vadd.f32 %v317, %v694
        %v696 = vpop.f32.mrf.mxu0
        %v697 = vadd.f32 %v317, %v696
        %698 = vdwg.mxu0
        %699 = vmatpush.bf16.msra.mxu0 %v588
        %700 = vmatpush.bf16.msra.mxu0 %v580
        %701 = vmatpush.bf16.msra.mxu0 %v572
        %702 = vmatpush.bf16.msra.mxu0 %v564
        %703 = vmatpush.bf16.msra.mxu0 %v556
        %704 = vmatpush.bf16.msra.mxu0 %v548
        %705 = vmatpush.bf16.msra.mxu0 %v540
        %706 = vmatpush.bf16.msra.mxu0 %v532
        %707 = vmatmul.bf16.gmra.mxu0 %v335
        %v708 = vpop.f32.mrf.mxu0
        %v709 = vadd.f32 %v318, %v708
        %v710 = vpop.f32.mrf.mxu0
        %v711 = vadd.f32 %v318, %v710
        %712 = vdwg.mxu0
        %713 = vmatpush.bf16.msra.mxu0 %v589
        %714 = vmatpush.bf16.msra.mxu0 %v581
        %715 = vmatpush.bf16.msra.mxu0 %v573
        %716 = vmatpush.bf16.msra.mxu0 %v565
        %717 = vmatpush.bf16.msra.mxu0 %v557
        %718 = vmatpush.bf16.msra.mxu0 %v549
        %719 = vmatpush.bf16.msra.mxu0 %v541
        %720 = vmatpush.bf16.msra.mxu0 %v533
        %721 = vmatmul.bf16.gmra.mxu0 %v335
        %v722 = vpop.f32.mrf.mxu0
        %v723 = vadd.f32 %v319, %v722
        %v724 = vpop.f32.mrf.mxu0
        %v725 = vadd.f32 %v319, %v724
        %726 = vdwg.mxu0
        %727 = vmatpush.bf16.msra.mxu0 %v590
        %728 = vmatpush.bf16.msra.mxu0 %v582
        %729 = vmatpush.bf16.msra.mxu0 %v574
        %730 = vmatpush.bf16.msra.mxu0 %v566
        %731 = vmatpush.bf16.msra.mxu0 %v558
        %732 = vmatpush.bf16.msra.mxu0 %v550
        %733 = vmatpush.bf16.msra.mxu0 %v542
        %734 = vmatpush.bf16.msra.mxu0 %v534
        %735 = vmatmul.bf16.gmra.mxu0 %v335
        %v736 = vpop.f32.mrf.mxu0
        %v737 = vadd.f32 %v320, %v736
        %v738 = vpop.f32.mrf.mxu0
        %v739 = vadd.f32 %v320, %v738
        %740 = vdwg.mxu0
        %741 = vmatpush.bf16.msra.mxu0 %v591
        %742 = vmatpush.bf16.msra.mxu0 %v583
        %743 = vmatpush.bf16.msra.mxu0 %v575
        %744 = vmatpush.bf16.msra.mxu0 %v567
        %745 = vmatpush.bf16.msra.mxu0 %v559
        %746 = vmatpush.bf16.msra.mxu0 %v551
        %747 = vmatpush.bf16.msra.mxu0 %v543
        %748 = vmatpush.bf16.msra.mxu0 %v535
        %749 = vmatmul.bf16.gmra.mxu0 %v335
        %v750 = vpop.f32.mrf.mxu0
        %v751 = vadd.f32 %v321, %v750
        %v752 = vpop.f32.mrf.mxu0
        %v753 = vadd.f32 %v321, %v752
        %754 = vdwg.mxu0
        %755 = vmatpush.bf16.msra.mxu0 %v592
        %756 = vmatpush.bf16.msra.mxu0 %v584
        %757 = vmatpush.bf16.msra.mxu0 %v576
        %758 = vmatpush.bf16.msra.mxu0 %v568
        %759 = vmatpush.bf16.msra.mxu0 %v560
        %760 = vmatpush.bf16.msra.mxu0 %v552
        %761 = vmatpush.bf16.msra.mxu0 %v544
        %762 = vmatpush.bf16.msra.mxu0 %v536
        %763 = vmatmul.bf16.gmra.mxu0 %v335
        %v764 = vpop.f32.mrf.mxu0
        %v765 = vadd.f32 %v322, %v764
        %v766 = vpop.f32.mrf.mxu0
        %v767 = vadd.f32 %v322, %v766
        %768 = vdwg.mxu0
        %v769 = vpack.c.bf16 %v681, %v667
        %v770 = vpack.c.bf16 %v709, %v695
        %v771 = vpack.c.bf16 %v737, %v723
        %v772 = vpack.c.bf16 %v765, %v751
        %v773 = vpack.c.bf16 %v683, %v669
        %v774 = vpack.c.bf16 %v711, %v697
        %v775 = vpack.c.bf16 %v739, %v725
        %v776 = vpack.c.bf16 %v767, %v753
        %777 = vst [vmem:[%s243] sm:$0xff] %v769
        %778 = vst [vmem:[%s243 + $0x8] sm:$0xff] %v770
        %779 = vst [vmem:[%s243 + $0x10] sm:$0xff] %v771
        %780 = vst [vmem:[%s243 + $0x18] sm:$0xff] %v772
        %781 = vst [vmem:[%s243 + $0x20] sm:$0xff] %v773
        %782 = vst [vmem:[%s243 + $0x28] sm:$0xff] %v774
        %783 = vst [vmem:[%s243 + $0x30] sm:$0xff] %v775
        %784 = vst [vmem:[%s243 + $0x38] sm:$0xff] %v776
        %s785 = sand.u32 %s102, 1
        %s786 = scalar_lea.sflag [#allocation4], %s785
        %s787 = sand.u32 %s102, 1
        %s788 = smul.addr %s787, 64
        %s789 = scalar_lea.vmem [#allocation8], %s788
        // Predicated region
        $region45: #{tpu_custom_call.1} parent=31 // pred_check
          %p790 = pneg %p112
        $region46: #{tpu_custom_call.1} parent=31 // pred_check_branch
          %792 = sbr.rel (%p790) target = $region48
        $region47: #{tpu_custom_call.1} parent=31 // pred_region
          %s793 = smul.u32 8, %s21
          %795 = vsyncadd %s786, 0
          %s796 = smul.addr %s793, 4
          %s797 = scalar_lea.hbm %s3, %s796
          %s798 = sshll.u32 %s789, 4
          %s799 = int_to_ptr.vmem [resolvable:$true] %s798
          %s800 = sshll.u32 %s797, 4
          %s801 = int_to_ptr.hbm [resolvable:$true] %s800
          %806 = dma.vmem_to_hbm [thread:$0]  %s799, 1024, %s801, %s786, 512, 2048, 32
        $region48: #{tpu_custom_call.1} parent=31 // pred_fallthru
          _
      $region32: #{tpu_custom_call.1} parent=5 // pred_fallthru
        _
      %p807 = scmp.le.s32.totalorder 2, %s16
      // Predicated region
      $region49: #{tpu_custom_call.1} parent=5 // pred_check
        %p808 = pneg %p807
      $region50: #{tpu_custom_call.1} parent=5 // pred_check_branch
        %810 = sbr.rel (%p808) target = $region52
      $region51: #{tpu_custom_call.1} parent=5 // pred_region
        %s811 = ssub.s32 %s16, 2
        // Predicated region
        $region53: #{tpu_custom_call.1} parent=51 // pred_check
          %p812 = pneg %p118
        $region54: #{tpu_custom_call.1} parent=51 // pred_check_branch
          %814 = sbr.rel (%p812) target = $region56
        $region55: #{tpu_custom_call.1} parent=51 // pred_region
          %s815 = sand.u32 %s103, 1
          %s816 = scalar_lea.sflag [#allocation4], %s815
          %s817 = sand.u32 %s103, 1
          %s818 = smul.addr %s817, 64
          %s819 = scalar_lea.vmem [#allocation8], %s818
          %821 = dma.done %s816, 1024
        $region56: #{tpu_custom_call.1} parent=51 // pred_fallthru
          _
      $region52: #{tpu_custom_call.1} parent=5 // pred_fallthru
        _
    $region6: #{tpu_custom_call.1} parent=1 // loop_footer
      %s20 = sadd.s32 1, %s16
    $region7: #{tpu_custom_call.1} parent=1 // loop_footer_branch
      %15 = sbr.rel target = $region3
    $region8: #{tpu_custom_call.1} parent=1 // loop_exit
      _
    %822 = vsyncpa [#allocation3], 1
    %s823 = scalar_lea.sflag [#allocation3], 1
    %824 = vsyncpa %s823, 1
    %825 = vsyncpa [#allocation6], 1
    %s826 = scalar_lea.sflag [#allocation6], 1
    %827 = vsyncpa %s826, 1
    %828 = vsyncpa [#allocation4], 1
    %s829 = scalar_lea.sflag [#allocation4], 1
    %830 = vsyncpa %s829, 1

</llo_original>
